<compile_context>
chip_gen: v6e
topology: v6e:2x2x1
jax: 0.10.0
libtpu: 0.0.40
codegen_flags: <defaults>
</compile_context>

<pallas_src>
import jax
import jax.numpy as jnp
from jax.experimental import pallas as pl
from jax.experimental.pallas import tpu as pltpu


def text_rnn_kernel(x_ref, h0_ref, w_ih_ref, w_hh_ref, b_ih_ref, b_hh_ref,
                    w_out_ref, b_out_ref, out_ref):
    """Full RNN recurrence + output projection on one VMEM-resident tile.

    x_ref:    (batch, seq_len, n_class)     -- batch-major, no host transpose needed
    h0_ref:   (1, batch, n_hidden)
    w_ih_ref: (n_class, n_hidden)   w_hh_ref: (n_hidden, n_hidden)
    b_ih_ref: (1, n_hidden)         b_hh_ref: (1, n_hidden)
    w_out_ref:(n_hidden, n_class)   b_out_ref:(1, n_class)
    out_ref:  (batch, n_class)
    """
    seq_len = x_ref.shape[1]

    # Stack input/hidden weights once: (n_class + n_hidden, n_hidden).
    w_cat = jnp.concatenate([w_ih_ref[...], w_hh_ref[...]], axis=0)
    # Hoisted bias sum: single (1, n_hidden) bias reused every step.
    b = b_ih_ref[...] + b_hh_ref[...]

    x = x_ref[...]        # whole (batch, seq, n_class) tile lives in vregs
    h = h0_ref[0]         # (batch, n_hidden)

    # seq_len is small & static -> fully unrolled recurrence.
    # One fused MXU matmul + one EUP tanh per timestep.
    for t in range(seq_len):
        xh = jnp.concatenate([x[:, t, :], h], axis=-1)   # (batch, n_class + n_hidden)
        h = jnp.tanh(jnp.dot(xh, w_cat, preferred_element_type=jnp.float32) + b)

    # model = outputs[-1] @ W + b
    out_ref[...] = (
        jnp.dot(h, w_out_ref[...], preferred_element_type=jnp.float32) + b_out_ref[...]
    )


def text_rnn_forward(hidden, X, params):
    """hidden: (1, batch, n_hidden); X: (batch, seq_len, n_class) one-hot float32."""
    batch, _, n_class = X.shape
    vmem = pl.BlockSpec(memory_space=pltpu.MemorySpace.VMEM)
    return pl.pallas_call(
        text_rnn_kernel,
        out_shape=jax.ShapeDtypeStruct((batch, n_class), jnp.float32),
        in_specs=[vmem] * 8,
        out_specs=vmem,
    )(X, hidden, params["w_ih"], params["w_hh"], params["b_ih"], params["b_hh"],
      params["W"], params["b"])


def text_rnn_reference(hidden, X, params):
    """Pure-JAX reference mirroring PyTorch semantics (for correctness check)."""
    x = jnp.transpose(X, (1, 0, 2)).astype(jnp.float32)
    h = hidden[0].astype(jnp.float32)
    for t in range(x.shape[0]):
        h = jnp.tanh(x[t] @ params["w_ih"] + params["b_ih"]
                     + h @ params["w_hh"] + params["b_hh"])
    return h @ params["W"] + params["b"]


if __name__ == "__main__":
    sentences = ['i like dog', 'i love coffee', 'i hate milk',
                 'you like cat', 'you love milk', 'you hate coffee']
    # Deterministic vocab (sorted instead of set() ordering).
    word_list = sorted(set(' '.join(sentences).split()))
    word_dict = {w: i for i, w in enumerate(word_list)}

    n_class = len(word_dict)          # 9
    n_hidden = 5
    batch_size = len(sentences)       # 6
    seq_len = 2                       # first two words predict the third

    # Build one-hot inputs (batch, seq_len, n_class) directly -- no host transpose.
    X_np = jnp.zeros((batch_size, seq_len, n_class), dtype=jnp.float32)
    for bi, sen in enumerate(sentences):
        words = sen.split()
        for t in range(seq_len):
            X_np = X_np.at[bi, t, word_dict[words[t]]].set(1.0)

    hidden0 = jnp.zeros((1, batch_size, n_hidden), dtype=jnp.float32)

    # Deterministic parameter init (shapes per nn.RNN(input_size=n_class,
    # hidden_size=n_hidden) and the module's W/b parameters, pre-transposed for x @ W).
    key = jax.random.PRNGKey(0)
    k1, k2, k3, k4, k5, k6 = jax.random.split(key, 6)
    params = {
        "w_ih": jax.random.normal(k1, (n_class, n_hidden), jnp.float32) * 0.1,
        "w_hh": jax.random.normal(k2, (n_hidden, n_hidden), jnp.float32) * 0.1,
        "b_ih": jax.random.normal(k3, (1, n_hidden), jnp.float32) * 0.1,
        "b_hh": jax.random.normal(k4, (1, n_hidden), jnp.float32) * 0.1,
        "W":    jax.random.normal(k5, (n_hidden, n_class), jnp.float32),
        "b":    jax.random.normal(k6, (1, n_class), jnp.float32),
    }

    out = text_rnn_forward(hidden0, X_np, params)
    out = jax.block_until_ready(out)

    ref = text_rnn_reference(hidden0, X_np, params)
    assert out.shape == (batch_size, n_class)
    assert jnp.allclose(out, ref, atol=1e-5, rtol=1e-5)

    print("KERNEL_OK")
</pallas_src>

<mosaic_0001>
module attributes {stable_mosaic.version = 11 : i64} {
  func.func @text_rnn_kernel(%arg0: memref<6x2x9xf32, #tpu.memory_space<vmem>>, %arg1: memref<1x6x5xf32, #tpu.memory_space<vmem>>, %arg2: memref<9x5xf32, #tpu.memory_space<vmem>>, %arg3: memref<5x5xf32, #tpu.memory_space<vmem>>, %arg4: memref<1x5xf32, #tpu.memory_space<vmem>>, %arg5: memref<1x5xf32, #tpu.memory_space<vmem>>, %arg6: memref<5x9xf32, #tpu.memory_space<vmem>>, %arg7: memref<1x9xf32, #tpu.memory_space<vmem>>, %arg8: memref<6x9xf32, #tpu.memory_space<vmem>>) attributes {dimension_semantics = [], scalar_prefetch = 0 : i64, scratch_operands = 0 : i64, tpu.core_type = #tpu.core_type<tc>} {
    %c0 = arith.constant 0 : index
    %c0_0 = arith.constant 0 : index
    %0 = vector.load %arg2[%c0, %c0_0] : memref<9x5xf32, #tpu.memory_space<vmem>>, vector<9x5xf32>
    %c0_1 = arith.constant 0 : index
    %c0_2 = arith.constant 0 : index
    %1 = vector.load %arg3[%c0_1, %c0_2] : memref<5x5xf32, #tpu.memory_space<vmem>>, vector<5x5xf32>
    %2 = tpu.concatenate %0, %1 in 0 : vector<9x5xf32>, vector<5x5xf32> -> vector<14x5xf32>
    %c0_3 = arith.constant 0 : index
    %c0_4 = arith.constant 0 : index
    %3 = vector.load %arg4[%c0_3, %c0_4] : memref<1x5xf32, #tpu.memory_space<vmem>>, vector<1x5xf32>
    %c0_5 = arith.constant 0 : index
    %c0_6 = arith.constant 0 : index
    %4 = vector.load %arg5[%c0_5, %c0_6] : memref<1x5xf32, #tpu.memory_space<vmem>>, vector<1x5xf32>
    %5 = arith.addf %3, %4 : vector<1x5xf32>
    %c0_7 = arith.constant 0 : index
    %c0_8 = arith.constant 0 : index
    %c0_9 = arith.constant 0 : index
    %6 = vector.load %arg0[%c0_7, %c0_8, %c0_9] : memref<6x2x9xf32, #tpu.memory_space<vmem>>, vector<6x2x9xf32>
    %c0_10 = arith.constant 0 : index
    %c0_11 = arith.constant 0 : index
    %c0_12 = arith.constant 0 : index
    %7 = vector.load %arg1[%c0_10, %c0_11, %c0_12] : memref<1x6x5xf32, #tpu.memory_space<vmem>>, vector<1x6x5xf32>
    %8 = vector.shape_cast %7 : vector<1x6x5xf32> to vector<6x5xf32>
    %9 = vector.extract_strided_slice %6 {offsets = [0, 0, 0], sizes = [6, 1, 9], strides = [1, 1, 1]} : vector<6x2x9xf32> to vector<6x1x9xf32>
    %10 = vector.shape_cast %9 : vector<6x1x9xf32> to vector<6x9xf32>
    %11 = tpu.concatenate %10, %8 in 1 : vector<6x9xf32>, vector<6x5xf32> -> vector<6x14xf32>
    %cst = arith.constant dense<0.000000e+00> : vector<6x5xf32>
    %12 = tpu.matmul %11, %2, %cst {dimension_numbers = #tpu.dot_dimension_numbers<[1], [0], [0], [1], [0, 0, 1, 1], [], []>} : vector<6x14xf32>, vector<14x5xf32>, vector<6x5xf32> -> vector<6x5xf32>
    %13 = vector.broadcast %5 : vector<1x5xf32> to vector<6x5xf32>
    %14 = arith.addf %12, %13 : vector<6x5xf32>
    %15 = math.tanh %14 : vector<6x5xf32>
    %16 = vector.extract_strided_slice %6 {offsets = [0, 1, 0], sizes = [6, 1, 9], strides = [1, 1, 1]} : vector<6x2x9xf32> to vector<6x1x9xf32>
    %17 = vector.shape_cast %16 : vector<6x1x9xf32> to vector<6x9xf32>
    %18 = tpu.concatenate %17, %15 in 1 : vector<6x9xf32>, vector<6x5xf32> -> vector<6x14xf32>
    %cst_13 = arith.constant dense<0.000000e+00> : vector<6x5xf32>
    %19 = tpu.matmul %18, %2, %cst_13 {dimension_numbers = #tpu.dot_dimension_numbers<[1], [0], [0], [1], [0, 0, 1, 1], [], []>} : vector<6x14xf32>, vector<14x5xf32>, vector<6x5xf32> -> vector<6x5xf32>
    %20 = vector.broadcast %5 : vector<1x5xf32> to vector<6x5xf32>
    %21 = arith.addf %19, %20 : vector<6x5xf32>
    %22 = math.tanh %21 : vector<6x5xf32>
    %c0_14 = arith.constant 0 : index
    %c0_15 = arith.constant 0 : index
    %23 = vector.load %arg6[%c0_14, %c0_15] : memref<5x9xf32, #tpu.memory_space<vmem>>, vector<5x9xf32>
    %cst_16 = arith.constant dense<0.000000e+00> : vector<6x9xf32>
    %24 = tpu.matmul %22, %23, %cst_16 {dimension_numbers = #tpu.dot_dimension_numbers<[1], [0], [0], [1], [0, 0, 1, 1], [], []>} : vector<6x5xf32>, vector<5x9xf32>, vector<6x9xf32> -> vector<6x9xf32>
    %c0_17 = arith.constant 0 : index
    %c0_18 = arith.constant 0 : index
    %25 = vector.load %arg7[%c0_17, %c0_18] : memref<1x9xf32, #tpu.memory_space<vmem>>, vector<1x9xf32>
    %26 = vector.broadcast %25 : vector<1x9xf32> to vector<6x9xf32>
    %27 = arith.addf %24, %26 : vector<6x9xf32>
    %c0_19 = arith.constant 0 : index
    %c0_20 = arith.constant 0 : index
    %28 = vector.load %arg8[%c0_19, %c0_20] : memref<6x9xf32, #tpu.memory_space<vmem>>, vector<6x9xf32>
    tpu.vector_store %arg8[%c0_19, %c0_20], %27 {strides = array<i32>} : memref<6x9xf32, #tpu.memory_space<vmem>>, vector<6x9xf32>,
    return
  }
}

</mosaic_0001>

<llo_original>
// kernel: tpu_custom_call.1
$region0: #{tpu_custom_call.1}
  #allocation0 [shape = 'u32[]', space=smem, size = 0x4, offset = 0x4, fixed_abs, tag = 'smem constant byte address 0x4 - core index']
  #allocation1 [shape = 'u32[144,128]{1,0:T(1,128)}', space=vmem, size = 0x12000, scoped, tag = 'internal scratch']
  %s0 = inlined_call_operand.vmem [shape: f32[6,2,9], index: 0, kind: input, shape index: {}]
  %s1 = inlined_call_operand.vmem [shape: f32[1,6,5], index: 1, kind: input, shape index: {}]
  %s2 = inlined_call_operand.vmem [shape: f32[9,5], index: 2, kind: input, shape index: {}]
  %s3 = inlined_call_operand.vmem [shape: f32[5,5], index: 3, kind: input, shape index: {}]
  %s4 = inlined_call_operand.vmem [shape: f32[1,5], index: 4, kind: input, shape index: {}]
  %s5 = inlined_call_operand.vmem [shape: f32[1,5], index: 5, kind: input, shape index: {}]
  %s6 = inlined_call_operand.vmem [shape: f32[5,9], index: 6, kind: input, shape index: {}]
  %s7 = inlined_call_operand.vmem [shape: f32[1,9], index: 7, kind: input, shape index: {}]
  %s8 = inlined_call_operand.hbm [shape: f32[6,9], index: 8, kind: output, shape index: {}]
  %s9 = sld [smem:[#allocation0]]
  $region42: #{tpu_custom_call.1} parent=0
    _
  %s11 = ssub.s32 1, %s9
  %s12 = scalar_select 0, %s11, %s9
  $region1: #{tpu_custom_call.1} parent=0
    #allocation2 [shape = 'u8[4096]{0}', space=vmem, size = 0x1000, scoped, tag = 'output window, operand 0, single buffered']
    #allocation3 [shape = 's32[1]{0}', space=sflag, size = 0x4, scoped, tag = 'scoped memory for tpu_custom_call.1']
    %13 = vsyncpa [#allocation3], 0
    // Predicated region
    $region2: #{tpu_custom_call.1} parent=1 // pred_check
      _
    $region3: #{tpu_custom_call.1} parent=1 // pred_check_branch
      %15 = sbr.rel (0) target = $region5
    $region4: #{tpu_custom_call.1} parent=1 // pred_region
      _
    $region5: #{tpu_custom_call.1} parent=1 // pred_fallthru
      _
    // Predicated region
    $region6: #{tpu_custom_call.1} parent=1 // pred_check
      _
    $region7: #{tpu_custom_call.1} parent=1 // pred_check_branch
      %17 = sbr.rel (0) target = $region9
    $region8: #{tpu_custom_call.1} parent=1 // pred_region
      _
    $region9: #{tpu_custom_call.1} parent=1 // pred_fallthru
      _
    // Predicated region
    $region10: #{tpu_custom_call.1} parent=1 // pred_check
      _
    $region11: #{tpu_custom_call.1} parent=1 // pred_check_branch
      %19 = sbr.rel (0) target = $region13
    $region12: #{tpu_custom_call.1} parent=1 // pred_region
      _
    $region13: #{tpu_custom_call.1} parent=1 // pred_fallthru
      _
    // Predicated region
    $region14: #{tpu_custom_call.1} parent=1 // pred_check
      _
    $region15: #{tpu_custom_call.1} parent=1 // pred_check_branch
      %21 = sbr.rel (0) target = $region17
    $region16: #{tpu_custom_call.1} parent=1 // pred_region
      _
    $region17: #{tpu_custom_call.1} parent=1 // pred_fallthru
      _
    // Predicated region
    $region18: #{tpu_custom_call.1} parent=1 // pred_check
      _
    $region19: #{tpu_custom_call.1} parent=1 // pred_check_branch
      %23 = sbr.rel (0) target = $region21
    $region20: #{tpu_custom_call.1} parent=1 // pred_region
      _
    $region21: #{tpu_custom_call.1} parent=1 // pred_fallthru
      _
    // Predicated region
    $region22: #{tpu_custom_call.1} parent=1 // pred_check
      _
    $region23: #{tpu_custom_call.1} parent=1 // pred_check_branch
      %25 = sbr.rel (0) target = $region25
    $region24: #{tpu_custom_call.1} parent=1 // pred_region
      _
    $region25: #{tpu_custom_call.1} parent=1 // pred_fallthru
      _
    // Predicated region
    $region26: #{tpu_custom_call.1} parent=1 // pred_check
      _
    $region27: #{tpu_custom_call.1} parent=1 // pred_check_branch
      %27 = sbr.rel (0) target = $region29
    $region28: #{tpu_custom_call.1} parent=1 // pred_region
      _
    $region29: #{tpu_custom_call.1} parent=1 // pred_fallthru
      _
    // Predicated region
    $region30: #{tpu_custom_call.1} parent=1 // pred_check
      _
    $region31: #{tpu_custom_call.1} parent=1 // pred_check_branch
      %29 = sbr.rel (0) target = $region33
    $region32: #{tpu_custom_call.1} parent=1 // pred_region
      _
    $region33: #{tpu_custom_call.1} parent=1 // pred_fallthru
      _
    %v30 = vld [vmem:[%s2] sm:$0xff]
    %v31 = vld [vmem:[%s2 + $0x8] sm:$0x1]
    %v32 = vld [vmem:[%s3] sm:$0x1f]
    %v34 = vrot.slane %v32, 7
    %vm36 = vcmask 1040384
    %v37 = vsel %vm36, %v31, %v34
    %v38 = vld [vmem:[%s4] sm:$0x1]
    %v39 = vld [vmem:[%s5] sm:$0x1]
    %v40 = vadd.f32 %v38, %v39
    %v41 = vld [vmem:[%s0] sm:$0x3]
    %v42 = vld [vmem:[%s0 + $0x2] sm:$0x3]
    %v43 = vld [vmem:[%s0 + $0x4] sm:$0x3]
    %v44 = vld [vmem:[%s0 + $0x6] sm:$0x3]
    %v45 = vld [vmem:[%s0 + $0x8] sm:$0x3]
    %v46 = vld [vmem:[%s0 + $0xa] sm:$0x3]
    %v47 = vld [vmem:[%s1] sm:$0x3f]
    %v54 = vrot.slane %v42, 7
    %vm55 = vcmask 1041409
    %v56 = vsel %vm55, %v54, %v41
    %v57 = vrot.slane %v43, 6
    %vm58 = vcmask 1042434
    %v59 = vsel %vm58, %v57, %v56
    %v60 = vrot.slane %v44, 5
    %vm61 = vcmask 1043459
    %v62 = vsel %vm61, %v60, %v59
    %v63 = vrot.slane %v45, 4
    %vm64 = vcmask 1044484
    %v65 = vsel %vm64, %v63, %v62
    %v66 = vrot.slane %v46, 3
    %vm67 = vcmask 1045509
    %v68 = vsel %vm67, %v66, %v65
    %71 = vrot.lane.b32.xlu0 %v47, 9
    %v72 = vpop.permute.xlu0 %71
    %vm74 = vcmask 72704
    %v75 = vsel %vm74, %v68, %v72
    %v77 = vlaneseq
    %v78 = vshrl.u32 %v77, 7
    %v79 = vsub.s32 0, %v78
    %v80 = vrot.slane %v40, %v79
    %vm82 = vcmask 113664
    %v84 = vsel %vm82, %v75, 0
    %vm86 = vcmask 1045504
    %v88 = vsel %vm86, %v37, 0
    %90 = vmatprep.subr.mxu0 0.0
    %91 = vmatpush1.msra.mxu0 0.0
    %92 = vmatprep.subr.mxu0 0.0
    %93 = vmatpush1.msra.mxu0 0.0
    %94 = vmatprep.subr.mxu0 0.0
    %95 = vmatpush1.msra.mxu0 0.0
    %96 = vmatprep.subr.mxu0 0.0
    %97 = vmatpush1.msra.mxu0 0.0
    %98 = vmatprep.subr.mxu0 0.0
    %99 = vmatpush1.msra.mxu0 0.0
    %100 = vmatprep.subr.mxu0 0.0
    %101 = vmatpush1.msra.mxu0 0.0
    %102 = vmatprep.subr.mxu0 0.0
    %103 = vmatpush1.msra.mxu0 0.0
    %104 = vmatprep.subr.mxu0 0.0
    %105 = vmatpush1.msra.mxu0 0.0
    %106 = vmatprep.subr.mxu0 0.0
    %107 = vmatpush1.msra.mxu0 0.0
    %108 = vmatprep.subr.mxu0 0.0
    %109 = vmatpush1.msra.mxu0 0.0
    %110 = vmatprep.subr.mxu0 0.0
    %111 = vmatpush1.msra.mxu0 0.0
    %112 = vmatprep.subr.mxu0 0.0
    %113 = vmatpush1.msra.mxu0 0.0
    %114 = vmatprep.subr.mxu0 0.0
    %115 = vmatpush1.msra.mxu0 0.0
    %116 = vmatprep.subr.mxu0 0.0
    %117 = vmatpush1.msra.mxu0 0.0
    %118 = vmatprep.subr.mxu0 0.0
    %119 = vmatpush1.msra.mxu0 %v88
    %120 = vmatprep.subr.mxu0 0.0
    %121 = vmatpush1.msra.mxu0 %v30
    %122 = vmatprep.subr.mxu0 0.0
    %123 = vmatpush2.msra.mxu0 0.0
    %124 = vmatprep.subr.mxu0 0.0
    %125 = vmatpush2.msra.mxu0 0.0
    %126 = vmatprep.subr.mxu0 0.0
    %127 = vmatpush2.msra.mxu0 0.0
    %128 = vmatprep.subr.mxu0 0.0
    %129 = vmatpush2.msra.mxu0 0.0
    %130 = vmatprep.subr.mxu0 0.0
    %131 = vmatpush2.msra.mxu0 0.0
    %132 = vmatprep.subr.mxu0 0.0
    %133 = vmatpush2.msra.mxu0 0.0
    %134 = vmatprep.subr.mxu0 0.0
    %135 = vmatpush2.msra.mxu0 0.0
    %136 = vmatprep.subr.mxu0 0.0
    %137 = vmatpush2.msra.mxu0 0.0
    %138 = vmatprep.subr.mxu0 0.0
    %139 = vmatpush2.msra.mxu0 0.0
    %140 = vmatprep.subr.mxu0 0.0
    %141 = vmatpush2.msra.mxu0 0.0
    %142 = vmatprep.subr.mxu0 0.0
    %143 = vmatpush2.msra.mxu0 0.0
    %144 = vmatprep.subr.mxu0 0.0
    %145 = vmatpush2.msra.mxu0 0.0
    %146 = vmatprep.subr.mxu0 0.0
    %147 = vmatpush2.msra.mxu0 0.0
    %148 = vmatprep.subr.mxu0 0.0
    %149 = vmatpush2.msra.mxu0 0.0
    %150 = vmatprep.subr.mxu0 0.0
    %151 = vmatpush2.msra.mxu0 0.0
    %152 = vmatprep.subr.mxu0 0.0
    %153 = vmatpush2.msra.mxu0 0.0
    %154 = vmatprep.mubr.f32.mxu0 0.0
    %155 = vmatmul.mubr.f32.gmra.mxu0 %v84
    %v156 = vpop.f32.mrf.mxu0
    %v157 = vadd.f32 %v80, %v156
    %v158 = vpop.f32.mrf.mxu0
    %159 = vdwg.mxu0
    %v160 = vtanh.pop %v157
    %v161 = vsel %vm58, %v54, %v41
    %v162 = vsel %vm61, %v57, %v161
    %v163 = vsel %vm64, %v60, %v162
    %v164 = vsel %vm67, %v63, %v163
    %vm165 = vcmask 1046534
    %v166 = vsel %vm165, %v66, %v164
    %v169 = vrot.slane %v160, 7
    %170 = vrot.lane.b32.xlu0 %v169, 9
    %v171 = vpop.permute.xlu0 %170
    %v173 = vsel %vm74, %v166, %v171
    %v175 = vrot.slane %v173, 1
    %v176 = vsel %vm82, %v175, 0
    %178 = vmatprep.subr.mxu0 0.0
    %179 = vmatpush1.msra.mxu0 0.0
    %180 = vmatprep.subr.mxu0 0.0
    %181 = vmatpush1.msra.mxu0 0.0
    %182 = vmatprep.subr.mxu0 0.0
    %183 = vmatpush1.msra.mxu0 0.0
    %184 = vmatprep.subr.mxu0 0.0
    %185 = vmatpush1.msra.mxu0 0.0
    %186 = vmatprep.subr.mxu0 0.0
    %187 = vmatpush1.msra.mxu0 0.0
    %188 = vmatprep.subr.mxu0 0.0
    %189 = vmatpush1.msra.mxu0 0.0
    %190 = vmatprep.subr.mxu0 0.0
    %191 = vmatpush1.msra.mxu0 0.0
    %192 = vmatprep.subr.mxu0 0.0
    %193 = vmatpush1.msra.mxu0 0.0
    %194 = vmatprep.subr.mxu0 0.0
    %195 = vmatpush1.msra.mxu0 0.0
    %196 = vmatprep.subr.mxu0 0.0
    %197 = vmatpush1.msra.mxu0 0.0
    %198 = vmatprep.subr.mxu0 0.0
    %199 = vmatpush1.msra.mxu0 0.0
    %200 = vmatprep.subr.mxu0 0.0
    %201 = vmatpush1.msra.mxu0 0.0
    %202 = vmatprep.subr.mxu0 0.0
    %203 = vmatpush1.msra.mxu0 0.0
    %204 = vmatprep.subr.mxu0 0.0
    %205 = vmatpush1.msra.mxu0 0.0
    %206 = vmatprep.subr.mxu0 0.0
    %207 = vmatpush1.msra.mxu0 %v88
    %208 = vmatprep.subr.mxu0 0.0
    %209 = vmatpush1.msra.mxu0 %v30
    %210 = vmatprep.subr.mxu0 0.0
    %211 = vmatpush2.msra.mxu0 0.0
    %212 = vmatprep.subr.mxu0 0.0
    %213 = vmatpush2.msra.mxu0 0.0
    %214 = vmatprep.subr.mxu0 0.0
    %215 = vmatpush2.msra.mxu0 0.0
    %216 = vmatprep.subr.mxu0 0.0
    %217 = vmatpush2.msra.mxu0 0.0
    %218 = vmatprep.subr.mxu0 0.0
    %219 = vmatpush2.msra.mxu0 0.0
    %220 = vmatprep.subr.mxu0 0.0
    %221 = vmatpush2.msra.mxu0 0.0
    %222 = vmatprep.subr.mxu0 0.0
    %223 = vmatpush2.msra.mxu0 0.0
    %224 = vmatprep.subr.mxu0 0.0
    %225 = vmatpush2.msra.mxu0 0.0
    %226 = vmatprep.subr.mxu0 0.0
    %227 = vmatpush2.msra.mxu0 0.0
    %228 = vmatprep.subr.mxu0 0.0
    %229 = vmatpush2.msra.mxu0 0.0
    %230 = vmatprep.subr.mxu0 0.0
    %231 = vmatpush2.msra.mxu0 0.0
    %232 = vmatprep.subr.mxu0 0.0
    %233 = vmatpush2.msra.mxu0 0.0
    %234 = vmatprep.subr.mxu0 0.0
    %235 = vmatpush2.msra.mxu0 0.0
    %236 = vmatprep.subr.mxu0 0.0
    %237 = vmatpush2.msra.mxu0 0.0
    %238 = vmatprep.subr.mxu0 0.0
    %239 = vmatpush2.msra.mxu0 0.0
    %240 = vmatprep.subr.mxu0 0.0
    %241 = vmatpush2.msra.mxu0 0.0
    %242 = vmatprep.mubr.f32.mxu0 0.0
    %243 = vmatmul.mubr.f32.gmra.mxu0 %v176
    %v244 = vpop.f32.mrf.mxu0
    %v245 = vadd.f32 %v80, %v244
    %v246 = vpop.f32.mrf.mxu0
    %247 = vdwg.mxu0
    %v248 = vtanh.pop %v245
    %v249 = vld [vmem:[%s6] sm:$0x1f]
    %v250 = vld [vmem:[%s7] sm:$0x1]
    %v252 = vlaneseq
    %v253 = vshrl.u32 %v252, 7
    %v254 = vsub.s32 0, %v253
    %v255 = vrot.slane %v250, %v254
    %vm257 = vcmask 39936
    %v259 = vsel %vm257, %v248, 0
    %vm261 = vcmask 1044480
    %v263 = vsel %vm261, %v249, 0
    %265 = vmatprep.subr.mxu0 0.0
    %266 = vmatpush1.msra.mxu0 0.0
    %267 = vmatprep.subr.mxu0 0.0
    %268 = vmatpush1.msra.mxu0 0.0
    %269 = vmatprep.subr.mxu0 0.0
    %270 = vmatpush1.msra.mxu0 0.0
    %271 = vmatprep.subr.mxu0 0.0
    %272 = vmatpush1.msra.mxu0 0.0
    %273 = vmatprep.subr.mxu0 0.0
    %274 = vmatpush1.msra.mxu0 0.0
    %275 = vmatprep.subr.mxu0 0.0
    %276 = vmatpush1.msra.mxu0 0.0
    %277 = vmatprep.subr.mxu0 0.0
    %278 = vmatpush1.msra.mxu0 0.0
    %279 = vmatprep.subr.mxu0 0.0
    %280 = vmatpush1.msra.mxu0 0.0
    %281 = vmatprep.subr.mxu0 0.0
    %282 = vmatpush1.msra.mxu0 0.0
    %283 = vmatprep.subr.mxu0 0.0
    %284 = vmatpush1.msra.mxu0 0.0
    %285 = vmatprep.subr.mxu0 0.0
    %286 = vmatpush1.msra.mxu0 0.0
    %287 = vmatprep.subr.mxu0 0.0
    %288 = vmatpush1.msra.mxu0 0.0
    %289 = vmatprep.subr.mxu0 0.0
    %290 = vmatpush1.msra.mxu0 0.0
    %291 = vmatprep.subr.mxu0 0.0
    %292 = vmatpush1.msra.mxu0 0.0
    %293 = vmatprep.subr.mxu0 0.0
    %294 = vmatpush1.msra.mxu0 0.0
    %295 = vmatprep.subr.mxu0 0.0
    %296 = vmatpush1.msra.mxu0 %v263
    %297 = vmatprep.subr.mxu0 0.0
    %298 = vmatpush2.msra.mxu0 0.0
    %299 = vmatprep.subr.mxu0 0.0
    %300 = vmatpush2.msra.mxu0 0.0
    %301 = vmatprep.subr.mxu0 0.0
    %302 = vmatpush2.msra.mxu0 0.0
    %303 = vmatprep.subr.mxu0 0.0
    %304 = vmatpush2.msra.mxu0 0.0
    %305 = vmatprep.subr.mxu0 0.0
    %306 = vmatpush2.msra.mxu0 0.0
    %307 = vmatprep.subr.mxu0 0.0
    %308 = vmatpush2.msra.mxu0 0.0
    %309 = vmatprep.subr.mxu0 0.0
    %310 = vmatpush2.msra.mxu0 0.0
    %311 = vmatprep.subr.mxu0 0.0
    %312 = vmatpush2.msra.mxu0 0.0
    %313 = vmatprep.subr.mxu0 0.0
    %314 = vmatpush2.msra.mxu0 0.0
    %315 = vmatprep.subr.mxu0 0.0
    %316 = vmatpush2.msra.mxu0 0.0
    %317 = vmatprep.subr.mxu0 0.0
    %318 = vmatpush2.msra.mxu0 0.0
    %319 = vmatprep.subr.mxu0 0.0
    %320 = vmatpush2.msra.mxu0 0.0
    %321 = vmatprep.subr.mxu0 0.0
    %322 = vmatpush2.msra.mxu0 0.0
    %323 = vmatprep.subr.mxu0 0.0
    %324 = vmatpush2.msra.mxu0 0.0
    %325 = vmatprep.subr.mxu0 0.0
    %326 = vmatpush2.msra.mxu0 0.0
    %327 = vmatprep.subr.mxu0 0.0
    %328 = vmatpush2.msra.mxu0 0.0
    %329 = vmatprep.mubr.f32.mxu0 0.0
    %330 = vmatmul.mubr.f32.gmra.mxu0 %v259
    %v331 = vpop.f32.mrf.mxu0
    %v332 = vadd.f32 %v255, %v331
    %v333 = vpop.f32.mrf.mxu0
    %334 = vdwg.mxu0
    %vm335 = vcmask 70656
    %336 = vst.msk [vmem:[#allocation2] sm:$0x3f] %vm335, %v332
    // Predicated region
    $region34: #{tpu_custom_call.1} parent=1 // pred_check
      _
    $region35: #{tpu_custom_call.1} parent=1 // pred_check_branch
      %338 = sbr.rel (0) target = $region37
    $region36: #{tpu_custom_call.1} parent=1 // pred_region
      %s340 = ssub.s32 128, 128
      %341 = vsyncadd [#allocation3], %s340
      %s343 = sshll.u32 [#allocation2], 4
      %s344 = int_to_ptr.vmem [resolvable:$true] %s343
      %346 = dma.vmem_to_hbm [thread:$0]  %s344, 128, %s8, [#allocation3]
    $region37: #{tpu_custom_call.1} parent=1 // pred_fallthru
      _
    // Predicated region
    $region38: #{tpu_custom_call.1} parent=1 // pred_check
      _
    $region39: #{tpu_custom_call.1} parent=1 // pred_check_branch
      %348 = sbr.rel (0) target = $region41
    $region40: #{tpu_custom_call.1} parent=1 // pred_region
      %349 = dma.done [#allocation3], 128
    $region41: #{tpu_custom_call.1} parent=1 // pred_fallthru
      _
    %350 = vsyncpa [#allocation3], 1

</llo_original>
